<compile_context>
chip_gen: v7x
topology: tpu7x:2x2x1
jax: 0.10.0
libtpu: 0.0.40
codegen_flags: <defaults>
</compile_context>

<pallas_src>
import numpy as np
import jax
import jax.numpy as jnp
from jax.experimental import pallas as pl
from jax.experimental.pallas import tpu as pltpu


_LANES = 128
_SUBLANES = 8
_TARGET_TILE_BYTES = 2 * 1024 * 1024   # per-block cap; 2 bufs x (in + out) ~= 8 MiB


def _copy_kernel(x_ref, o_ref):
    # Parameter-free pass-through. With input_output_aliases={0: 0} the store
    # lands in the same HBM buffer the block was read from (in-place identity).
    o_ref[...] = x_ref[...]


def _lane_dense_2d(x: jax.Array) -> jax.Array:
    """Flatten x to a lane-dense 2D view (rows, cols), cols % 128 == 0 when possible."""
    last = x.shape[-1] if x.ndim else 1
    n = x.size
    if last % _LANES == 0:
        return x.reshape(-1, last)          # last dim already lane-dense
    if n % _LANES == 0:
        return x.reshape(-1, _LANES)        # fully flat lane-dense view
    # Fallback for awkward sizes (masked partial-lane stores; not hit in the demo).
    return x.reshape(-1, last)


def _row_tile(rows: int, cols: int, itemsize: int) -> int:
    """Largest row tile that fits the byte cap and satisfies the (8, 128) rule."""
    max_rows = max(_SUBLANES, _TARGET_TILE_BYTES // max(1, cols * itemsize))
    max_rows = (max_rows // _SUBLANES) * _SUBLANES
    if rows <= max_rows:
        return rows        # block equals full extent -> always legal
    return max_rows        # multiple of 8 -> legal; final partial block is masked


def base_transformer_forward(x: jax.Array) -> jax.Array:
    """Pallas 'forward' of BaseTransformer: identity over the input tensor."""
    orig_shape = x.shape
    x2 = _lane_dense_2d(x)
    rows, cols = x2.shape
    tile_rows = _row_tile(rows, cols, x2.dtype.itemsize)
    grid = (pl.cdiv(rows, tile_rows),)

    y2 = pl.pallas_call(
        _copy_kernel,
        out_shape=jax.ShapeDtypeStruct((rows, cols), x2.dtype),
        grid=grid,
        in_specs=[pl.BlockSpec((tile_rows, cols), lambda i: (i, 0))],
        out_specs=pl.BlockSpec((tile_rows, cols), lambda i: (i, 0)),
        # Output aliases input: in-place identity, no second HBM allocation.
        input_output_aliases={0: 0},
        compiler_params=pltpu.CompilerParams(
            dimension_semantics=("parallel",),      # row tiles shard across TCs (v7x)
            vmem_limit_bytes=32 * 1024 * 1024,      # explicit; >> 2x(in+out) tile bytes
        ),
    )(x2)
    return y2.reshape(orig_shape)


def configure_params(params: dict):
    """JAX analogue of BaseTransformer.configure_params().

    The bare base class registers no parameters, so both decay and no_decay
    sets are empty (mirrors the PyTorch behaviour exactly for this module).
    """
    decay, no_decay = set(), set()
    param_names = set(params.keys())
    inter = decay & no_decay
    union = decay | no_decay
    assert len(inter) == 0, (
        "parameters %s made it into both decay/no_decay sets!" % str(inter))
    assert len(param_names - union) == 0, (
        "parameters %s were not separated into either decay/no_decay set!"
        % str(param_names - union))
    return ([params[n] for n in sorted(decay)],
            [params[n] for n in sorted(no_decay)])


if __name__ == "__main__":
    key = jax.random.PRNGKey(0)
    B, S, D = 2, 8, 32  # batch, seq, hidden
    x = jax.random.normal(key, (B, S, D), dtype=jnp.float32)
    x_host = np.asarray(x)  # host snapshot (x's device buffer is donated below)

    # BaseTransformer has no parameters (deterministically "initialized" empty).
    params = {}
    decay, no_decay = configure_params(params)
    assert decay == [] and no_decay == []

    # Donate x so the aliased pallas output can reuse the input buffer in place.
    fwd = jax.jit(base_transformer_forward, donate_argnums=(0,))
    y = jax.block_until_ready(fwd(x))

    # Forward of the abstract base is a pass-through; verify exactness bitwise.
    assert y.shape == x_host.shape and y.dtype == x_host.dtype
    assert np.array_equal(np.asarray(y), x_host)

    print("KERNEL_OK")
</pallas_src>

<mosaic_0001>
module attributes {stable_mosaic.version = 11 : i64} {
  func.func @_copy_kernel(%arg0: i32, %arg1: memref<4x128xf32, #tpu.memory_space<vmem>>, %arg2: memref<4x128xf32, #tpu.memory_space<vmem>>) attributes {dimension_semantics = [#tpu.dimension_semantics<parallel>], iteration_bounds = array<i64: 1>, scalar_prefetch = 0 : i64, scratch_operands = 0 : i64, tpu.core_type = #tpu.core_type<tc>, window_params = [{transform_indices = @transform_0, window_bounds = array<i64: 4, 128>}, {transform_indices = @transform_1, window_bounds = array<i64: 4, 128>}]} {
    %c0 = arith.constant 0 : index
    %c0_0 = arith.constant 0 : index
    %0 = vector.load %arg1[%c0, %c0_0] : memref<4x128xf32, #tpu.memory_space<vmem>>, vector<4x128xf32>
    %c0_1 = arith.constant 0 : index
    %c0_2 = arith.constant 0 : index
    %1 = vector.load %arg2[%c0_1, %c0_2] : memref<4x128xf32, #tpu.memory_space<vmem>>, vector<4x128xf32>
    tpu.vector_store %arg2[%c0_1, %c0_2], %0 {strides = array<i32>} : memref<4x128xf32, #tpu.memory_space<vmem>>, vector<4x128xf32>,
    return
  }
  func.func @transform_0(%arg0: i32) -> (i32, i32) {
    %c0_i32 = arith.constant 0 : i32
    %c0_i32_0 = arith.constant 0 : i32
    return %arg0, %c0_i32 : i32, i32
  }
  func.func @transform_1(%arg0: i32) -> (i32, i32) {
    %c0_i32 = arith.constant 0 : i32
    %c0_i32_0 = arith.constant 0 : i32
    return %arg0, %c0_i32 : i32, i32
  }
}

</mosaic_0001>

<llo_original>
// kernel: base_transformer_forward.1
$region0: #{base_transformer_forward.1}
  #allocation0 [shape = 'u32[]', space=smem, size = 0x4, offset = 0x4, fixed_abs, tag = 'smem constant byte address 0x4 - core index']
  #allocation1 [shape = 'u32[144,128]{1,0:T(1,128)}', space=vmem, size = 0x12000, scoped, tag = 'internal scratch']
  %s0 = inlined_call_operand.vmem [shape: f32[4,128], index: 0, kind: input, shape index: {}, may-alias: {0,1}]
  %s1 = inlined_call_operand.vmem [shape: f32[4,128], index: 1, kind: output, shape index: {}, may-alias: {0,1}]
  %s2 = sld [smem:[#allocation0]]
  $region14: #{base_transformer_forward.1} parent=0
    _
  %s4 = ssub.s32 1, %s2
  %s5 = scalar_select 0, %s4, %s2
  // Predicated region
  $region2: #{base_transformer_forward.1} parent=0 // pred_check
    _
  $region3: #{base_transformer_forward.1} parent=0 // pred_check_branch
    %7 = sbr.rel (0) target = $region5
  $region4: #{base_transformer_forward.1} parent=0 // pred_region
    _
  $region5: #{base_transformer_forward.1} parent=0 // pred_fallthru
    _
  %v8 = vld [vmem:[%s0] sm:$0xf]
  %9 = vst [vmem:[%s1] sm:$0xf] %v8
  // Predicated region
  $region6: #{base_transformer_forward.1} parent=0 // pred_check
    _
  $region7: #{base_transformer_forward.1} parent=0 // pred_check_branch
    %11 = sbr.rel (0) target = $region9
  $region8: #{base_transformer_forward.1} parent=0 // pred_region
    _
  $region9: #{base_transformer_forward.1} parent=0 // pred_fallthru
    _
  // Predicated region
  $region10: #{base_transformer_forward.1} parent=0 // pred_check
    _
  $region11: #{base_transformer_forward.1} parent=0 // pred_check_branch
    %13 = sbr.rel (0) target = $region13
  $region12: #{base_transformer_forward.1} parent=0 // pred_region
    _
  $region13: #{base_transformer_forward.1} parent=0 // pred_fallthru
    _

</llo_original>
